<compile_context>
chip_gen: v7x
topology: tpu7x:2x2x1
jax: 0.10.0
libtpu: 0.0.40
codegen_flags: <defaults>
</compile_context>

<pallas_src>
import functools

import jax
import jax.numpy as jnp
from jax.experimental import pallas as pl
from jax.experimental.pallas import tpu as pltpu

EPS = 1e-5  # nn.BatchNorm2d default


def _round_up(x, m):
    return (x + m - 1) // m * m


# ---------------------------------------------------------------------------
# Pass 1: conv-as-matmul (single K step, resident weights) + per-tile batch
#         statistics from the f32 accumulator; activation written back bf16.
# ---------------------------------------------------------------------------
def _conv_stats_kernel(p_ref, w_ref, y_ref, stats_ref):
    # (tm, k_pad) @ (k_pad, c_pad) on the MXU, f32 accumulation.
    acc = jnp.dot(p_ref[...], w_ref[...], preferred_element_type=jnp.float32)
    s = jnp.sum(acc, axis=0, keepdims=True)          # (1, c_pad)
    sq = jnp.sum(acc * acc, axis=0, keepdims=True)   # (1, c_pad)
    stats_ref[...] = jnp.concatenate([s, sq], axis=0)  # (2, c_pad), exact f32
    y_ref[...] = acc.astype(y_ref.dtype)             # bf16 writeback (1/2 bytes)


# ---------------------------------------------------------------------------
# Pass 2: folded BatchNorm scale/shift + per-channel PReLU, fused with the
#         NHWC->NCHW layout change (XLU transpose rides an otherwise idle slot;
#         only the real Cout channels are stored, lane dim = tm is 128-dense).
# ---------------------------------------------------------------------------
def _bn_prelu_kernel(cout, y_ref, scale_ref, shift_ref, alpha_ref, o_ref):
    y = y_ref[...].astype(jnp.float32)                 # (tm, c_pad)
    z = y * scale_ref[...] + shift_ref[...]
    z = jnp.where(z > 0.0, z, alpha_ref[...] * z)
    o_ref[...] = z.T[:cout, :]                         # (cout, tm) -> NCHW slab


def conv_block_forward(x_nchw, weight_hwio, gamma, beta, alpha,
                       *, kh=3, kw=3, pad=1, tm=512):
    """ConvBlock forward: Conv2d(stride 1, padding `pad`, no bias) ->
    BatchNorm2d (batch statistics) -> PReLU(num_parameters=Cout)."""
    N, Cin, H, W = x_nchw.shape
    Cout = weight_hwio.shape[-1]
    HW = H * W
    M = N * HW                       # true element count for the batch stats
    K = kh * kw * Cin

    # ---- tile / lane sizing -------------------------------------------------
    # 128-multiples are lane-dense on v5e/v6e/v7x; 256 alignment only pays once
    # the kernel stops being HBM-bound, and would inflate y/out traffic here.
    c_pad = _round_up(Cout, 128)
    k_pad = _round_up(K, 128)
    tm = max(128, min(_round_up(tm, 128), _round_up(HW, 128)))
    mb = pl.cdiv(HW, tm)
    m_img_pad = mb * tm              # per-image M, padded to the tile

    # ---- lean im2col: bf16 before patches, single combined pad --------------
    x = jnp.transpose(x_nchw, (0, 2, 3, 1)).astype(jnp.bfloat16)   # NHWC bf16
    xp = jnp.pad(x, ((0, 0), (pad, pad), (pad, pad), (0, 0)))
    patches = jnp.concatenate(
        [xp[:, i:i + H, j:j + W, :] for i in range(kh) for j in range(kw)],
        axis=-1).reshape(N, HW, K)
    p3d = jnp.pad(patches, ((0, 0), (0, m_img_pad - HW), (0, k_pad - K)))

    w2d = jnp.pad(weight_hwio.reshape(K, Cout).astype(jnp.bfloat16),
                  ((0, k_pad - K), (0, c_pad - Cout)))

    # ---- pass 1: conv + partial stats ----------------------------------------
    flops = 2 * N * m_img_pad * k_pad * c_pad
    bytes_accessed = (N * m_img_pad * k_pad * 2 + k_pad * c_pad * 2
                      + N * m_img_pad * c_pad * 2 + N * mb * 2 * c_pad * 4)
    p1_ws = (2 * (tm * k_pad * 2 + k_pad * c_pad * 2 + tm * c_pad * 2
                  + 2 * c_pad * 4) + tm * c_pad * 4)
    vmem1 = int(min(64 * 1024 * 1024, max(16 * 1024 * 1024, 2 * p1_ws)))

    y3d, stats = pl.pallas_call(
        _conv_stats_kernel,
        out_shape=(jax.ShapeDtypeStruct((N, m_img_pad, c_pad), jnp.bfloat16),
                   jax.ShapeDtypeStruct((N, mb, 2, c_pad), jnp.float32)),
        grid_spec=pltpu.PrefetchScalarGridSpec(
            num_scalar_prefetch=0,
            grid=(N, mb),
            in_specs=[
                pl.BlockSpec((None, tm, k_pad), lambda n, m: (n, m, 0)),
                # constant block index -> weights DMA'd once, stay resident
                pl.BlockSpec((k_pad, c_pad), lambda n, m: (0, 0)),
            ],
            out_specs=[
                pl.BlockSpec((None, tm, c_pad), lambda n, m: (n, m, 0)),
                pl.BlockSpec((None, None, 2, c_pad), lambda n, m: (n, m, 0, 0)),
            ],
        ),
        compiler_params=pltpu.CompilerParams(
            dimension_semantics=("parallel", "parallel"),
            vmem_limit_bytes=vmem1),
        cost_estimate=pl.CostEstimate(flops=flops, transcendentals=0,
                                      bytes_accessed=bytes_accessed),
    )(p3d, w2d)

    # ---- fold batch stats into per-channel scale/shift (tiny, wrapper) -------
    # Zero-padded M rows / Cout columns contribute exactly 0 to the sums (no
    # conv bias), so dividing by the true M gives the exact batch statistics.
    # TODO(synk): E[y^2]-E[y]^2 in f32 can cancel for large-mean activations;
    # switch to a per-tile Welford merge if BN parity at scale matters.
    total = jnp.sum(stats, axis=(0, 1))                  # (2, c_pad)
    mean = total[0] * (1.0 / M)
    var = jnp.maximum(total[1] * (1.0 / M) - mean * mean, 0.0)
    gamma_p = jnp.pad(gamma.astype(jnp.float32), (0, c_pad - Cout),
                      constant_values=1.0)
    beta_p = jnp.pad(beta.astype(jnp.float32), (0, c_pad - Cout))
    alpha_p = jnp.pad(alpha.astype(jnp.float32), (0, c_pad - Cout))
    scale = gamma_p * jax.lax.rsqrt(var + EPS)
    shift = beta_p - mean * scale

    # ---- pass 2: normalize + PReLU + fused NCHW layout ------------------------
    p2_ws = (2 * (tm * c_pad * 2 + Cout * tm * 4 + 3 * c_pad * 4)
             + 2 * tm * c_pad * 4)
    vmem2 = int(min(64 * 1024 * 1024, max(16 * 1024 * 1024, 2 * p2_ws)))
    out3 = pl.pallas_call(
        functools.partial(_bn_prelu_kernel, Cout),
        out_shape=jax.ShapeDtypeStruct((N, Cout, m_img_pad), jnp.float32),
        grid_spec=pltpu.PrefetchScalarGridSpec(
            num_scalar_prefetch=0,
            grid=(N, mb),
            in_specs=[
                pl.BlockSpec((None, tm, c_pad), lambda n, m: (n, m, 0)),
                pl.BlockSpec((1, c_pad), lambda n, m: (0, 0)),
                pl.BlockSpec((1, c_pad), lambda n, m: (0, 0)),
                pl.BlockSpec((1, c_pad), lambda n, m: (0, 0)),
            ],
            out_specs=pl.BlockSpec((None, Cout, tm), lambda n, m: (n, 0, m)),
        ),
        compiler_params=pltpu.CompilerParams(
            dimension_semantics=("parallel", "parallel"),
            vmem_limit_bytes=vmem2),
    )(y3d, scale.reshape(1, c_pad), shift.reshape(1, c_pad),
      alpha_p.reshape(1, c_pad))

    if m_img_pad != HW:
        out3 = out3[:, :, :HW]
    return out3.reshape(N, Cout, H, W)   # already NCHW, no extra transpose


def _reference(x_nchw, weight_hwio, gamma, beta, alpha, pad=1):
    # Plain-JAX f32 reference (module semantics) for a sanity check.
    x = jnp.transpose(x_nchw, (0, 2, 3, 1)).astype(jnp.float32)
    y = jax.lax.conv_general_dilated(
        x, weight_hwio.astype(jnp.float32),
        window_strides=(1, 1), padding=[(pad, pad), (pad, pad)],
        dimension_numbers=("NHWC", "HWIO", "NHWC"),
    )
    mean = jnp.mean(y, axis=(0, 1, 2), keepdims=True)
    var = jnp.mean((y - mean) ** 2, axis=(0, 1, 2), keepdims=True)
    y_bn = (y - mean) * jax.lax.rsqrt(var + EPS) * gamma + beta
    y_act = jnp.where(y_bn > 0, y_bn, alpha * y_bn)
    return jnp.transpose(y_act, (0, 3, 1, 2))


if __name__ == "__main__":
    key = jax.random.PRNGKey(0)
    k_x, k_w = jax.random.split(key)

    N, Cin, H, W = 2, 4, 16, 16
    Cout, KH, KW = 8, 3, 3

    x = jax.random.normal(k_x, (N, Cin, H, W), dtype=jnp.float32)
    # Conv weight in HWIO layout (synthetic deterministic init).
    weight_hwio = 0.1 * jax.random.normal(k_w, (KH, KW, Cin, Cout),
                                          dtype=jnp.float32)
    # Non-trivial per-channel BN / PReLU parameters to exercise the epilogue.
    gamma = 1.0 + 0.05 * jnp.arange(Cout, dtype=jnp.float32)
    beta = 0.02 * jnp.arange(Cout, dtype=jnp.float32)
    alpha = 0.10 + 0.02 * jnp.arange(Cout, dtype=jnp.float32)

    # tm=128 -> 2 m-tiles per image: exercises the pipelined multi-tile path
    # (and tm | H*W, so the post-kernel slice is skipped entirely).
    out = conv_block_forward(x, weight_hwio, gamma, beta, alpha, tm=128)
    out = jax.block_until_ready(out)

    ref = _reference(x, weight_hwio, gamma, beta, alpha)
    assert out.shape == (N, Cout, H, W)
    # bf16 matmul inputs + bf16 activation intermediate (f32 stats/epilogue)
    # -> compare against the pure-f32 reference at bf16-level tolerance.
    err = float(jnp.max(jnp.abs(out - ref)))
    assert jnp.allclose(out, ref, atol=4e-2, rtol=4e-2), err

    print("KERNEL_OK")
</pallas_src>

<mosaic_0001>
module attributes {stable_mosaic.version = 11 : i64} {
  func.func @_conv_stats_kernel(%arg0: i32, %arg1: i32, %arg2: memref<1x128x128xbf16, #tpu.memory_space<vmem>>, %arg3: memref<128x128xbf16, #tpu.memory_space<vmem>>, %arg4: memref<1x128x128xbf16, #tpu.memory_space<vmem>>, %arg5: memref<1x1x2x128xf32, #tpu.memory_space<vmem>>) attributes {dimension_semantics = [#tpu.dimension_semantics<parallel>, #tpu.dimension_semantics<parallel>], iteration_bounds = array<i64: 2, 2>, scalar_prefetch = 0 : i64, scratch_operands = 0 : i64, tpu.core_type = #tpu.core_type<tc>, window_params = [{transform_indices = @transform_0, window_bounds = array<i64: 1, 128, 128>}, {pipeline_mode = #tpu.pipeline_mode<synchronous>, transform_indices = @transform_1, window_bounds = array<i64: 128, 128>}, {transform_indices = @transform_2, window_bounds = array<i64: 1, 128, 128>}, {transform_indices = @transform_3, window_bounds = array<i64: 1, 1, 2, 128>}]} {
    %c0 = arith.constant 0 : index
    %c0_0 = arith.constant 0 : index
    %c0_1 = arith.constant 0 : index
    %0 = vector.load %arg2[%c0, %c0_0, %c0_1] : memref<1x128x128xbf16, #tpu.memory_space<vmem>>, vector<1x128x128xbf16>
    %1 = vector.shape_cast %0 : vector<1x128x128xbf16> to vector<128x128xbf16>
    %c0_2 = arith.constant 0 : index
    %c0_3 = arith.constant 0 : index
    %2 = vector.load %arg3[%c0_2, %c0_3] : memref<128x128xbf16, #tpu.memory_space<vmem>>, vector<128x128xbf16>
    %cst = arith.constant dense<0.000000e+00> : vector<128x128xf32>
    %3 = tpu.matmul %1, %2, %cst {dimension_numbers = #tpu.dot_dimension_numbers<[1], [0], [0], [1], [0, 0, 1, 1], [], []>} : vector<128x128xbf16>, vector<128x128xbf16>, vector<128x128xf32> -> vector<128x128xf32>
    %cst_4 = arith.constant dense<0.000000e+00> : vector<128xf32>
    %4 = vector.multi_reduction <add>, %3, %cst_4 [0] : vector<128x128xf32> to vector<128xf32>
    %5 = vector.shape_cast %4 : vector<128xf32> to vector<1x128xf32>
    %6 = arith.mulf %3, %3 : vector<128x128xf32>
    %cst_5 = arith.constant dense<0.000000e+00> : vector<128xf32>
    %7 = vector.multi_reduction <add>, %6, %cst_5 [0] : vector<128x128xf32> to vector<128xf32>
    %8 = vector.shape_cast %7 : vector<128xf32> to vector<1x128xf32>
    %9 = tpu.concatenate %5, %8 in 0 : vector<1x128xf32>, vector<1x128xf32> -> vector<2x128xf32>
    %c0_6 = arith.constant 0 : index
    %c0_7 = arith.constant 0 : index
    %c0_8 = arith.constant 0 : index
    %c0_9 = arith.constant 0 : index
    %10 = vector.load %arg5[%c0_6, %c0_7, %c0_8, %c0_9] : memref<1x1x2x128xf32, #tpu.memory_space<vmem>>, vector<1x1x2x128xf32>
    %11 = vector.shape_cast %10 : vector<1x1x2x128xf32> to vector<2x128xf32>
    %12 = vector.shape_cast %9 : vector<2x128xf32> to vector<1x1x2x128xf32>
    tpu.vector_store %arg5[%c0_6, %c0_7, %c0_8, %c0_9], %12 {strides = array<i32>} : memref<1x1x2x128xf32, #tpu.memory_space<vmem>>, vector<1x1x2x128xf32>,
    %13 = arith.truncf %3 : vector<128x128xf32> to vector<128x128xbf16>
    %c0_10 = arith.constant 0 : index
    %c0_11 = arith.constant 0 : index
    %c0_12 = arith.constant 0 : index
    %14 = vector.load %arg4[%c0_10, %c0_11, %c0_12] : memref<1x128x128xbf16, #tpu.memory_space<vmem>>, vector<1x128x128xbf16>
    %15 = vector.shape_cast %14 : vector<1x128x128xbf16> to vector<128x128xbf16>
    %16 = vector.shape_cast %13 : vector<128x128xbf16> to vector<1x128x128xbf16>
    tpu.vector_store %arg4[%c0_10, %c0_11, %c0_12], %16 {strides = array<i32>} : memref<1x128x128xbf16, #tpu.memory_space<vmem>>, vector<1x128x128xbf16>,
    return
  }
  func.func @transform_0(%arg0: i32, %arg1: i32) -> (i32, i32, i32) {
    %c0_i32 = arith.constant 0 : i32
    %c0_i32_0 = arith.constant 0 : i32
    return %arg0, %arg1, %c0_i32 : i32, i32, i32
  }
  func.func @transform_1(%arg0: i32, %arg1: i32) -> (i32, i32) {
    %c0_i32 = arith.constant 0 : i32
    %c0_i32_0 = arith.constant 0 : i32
    %c0_i32_1 = arith.constant 0 : i32
    return %c0_i32, %c0_i32_0 : i32, i32
  }
  func.func @transform_2(%arg0: i32, %arg1: i32) -> (i32, i32, i32) {
    %c0_i32 = arith.constant 0 : i32
    %c0_i32_0 = arith.constant 0 : i32
    return %arg0, %arg1, %c0_i32 : i32, i32, i32
  }
  func.func @transform_3(%arg0: i32, %arg1: i32) -> (i32, i32, i32, i32) {
    %c0_i32 = arith.constant 0 : i32
    %c0_i32_0 = arith.constant 0 : i32
    %c0_i32_1 = arith.constant 0 : i32
    return %arg0, %arg1, %c0_i32, %c0_i32_0 : i32, i32, i32, i32
  }
}

</mosaic_0001>

<llo_original>
// kernel: tpu_custom_call.1
$region0: #{tpu_custom_call.1}
  #allocation0 [shape = 'u32[]', space=smem, size = 0x4, offset = 0x4, fixed_abs, tag = 'smem constant byte address 0x4 - core index']
  #allocation1 [shape = 'u32[144,128]{1,0:T(1,128)}', space=vmem, size = 0x12000, scoped, tag = 'internal scratch']
  %s0 = inlined_call_operand.hbm [shape: bf16[2,256,128], index: 0, kind: input, shape index: {}]
  %s1 = inlined_call_operand.hbm [shape: bf16[128,128], index: 1, kind: input, shape index: {}]
  %s2 = inlined_call_operand.hbm [shape: bf16[2,256,128], index: 2, kind: output, shape index: {0}]
  %s3 = inlined_call_operand.hbm [shape: f32[2,2,2,128], index: 3, kind: output, shape index: {1}]
  %4 = xla_tuple %s2, %s3
  %s5 = sld [smem:[#allocation0]]
  $region57: #{tpu_custom_call.1} parent=0
    _
  %s7 = ssub.s32 1, %s5
  %s8 = scalar_select 0, %s7, %s5
  $region1: #{tpu_custom_call.1} parent=0
    #allocation2 [shape = 'u8[65536]{0}', space=vmem, size = 0x10000, scoped, tag = 'input window, operand 0']
    #allocation3 [shape = 's32[2]{0}', space=sflag, size = 0x8, scoped, tag = 'scoped memory for tpu_custom_call.1']
    #allocation4 [shape = 's32[2]{0}', space=sflag, size = 0x8, scoped, tag = 'scoped memory for tpu_custom_call.1']
    #allocation5 [shape = 'u8[32768]{0}', space=vmem, size = 0x8000, scoped, tag = 'input window, operand 1, single buffered']
    #allocation6 [shape = 's32[1]{0}', space=sflag, size = 0x4, scoped, tag = 'scoped memory for tpu_custom_call.1']
    #allocation7 [shape = 'u8[65536]{0}', space=vmem, size = 0x10000, scoped, tag = 'output window, operand 0']
    #allocation8 [shape = 'u8[2048]{0}', space=vmem, size = 0x800, scoped, tag = 'output window, operand 1']
    #allocation9 [shape = 's32[2]{0}', space=sflag, size = 0x8, scoped, tag = 'scoped memory for tpu_custom_call.1']
    %9 = vsyncpa [#allocation3], 0
    %s10 = scalar_lea.sflag [#allocation3], 1
    %11 = vsyncpa %s10, 0
    %12 = vsyncpa [#allocation6], 0
    %13 = vsyncpa [#allocation4], 0
    %s14 = scalar_lea.sflag [#allocation4], 1
    %15 = vsyncpa %s14, 0
    %16 = vsyncpa [#allocation9], 0
    %s17 = scalar_lea.sflag [#allocation9], 1
    %18 = vsyncpa %s17, 0
    loop: start=0, step=1, limit=6
    $region2: #{tpu_custom_call.1} parent=1 // loop_pre_header
      _
    $region3: #{tpu_custom_call.1} parent=1 // loop_header
      %s20 = sphi 0, %s24
      %p21 = scmp.ge.s32.totalorder %s20, 6
      %s27 = sphi 0, %s39
      %s28 = sphi 0, %s35
      %s29 = sphi 0, %s27
      %s30 = sphi 0, %s28
      %s31 = sphi 0, %s29
      %s32 = sphi 0, %s30
      %s44 = sphi 0, %s46
      %s47 = sphi 0, %s44
      %s48 = sphi 0, %s47
      %s64 = sphi 0, %s48
      %s68 = sphi 0, %s68
      %s70 = sphi 0, %s68
      %s71 = sphi 0, %s70
      %s85 = sphi 0, %s71
      %s93 = sphi 0, %s95
      %s96 = sphi 0, %s93
      %s97 = sphi 0, %s96
      %s113 = sphi 0, %s97
      %s121 = sphi 0, %s123
      %s124 = sphi 0, %s121
      %s125 = sphi 0, %s124
      %s141 = sphi 0, %s125
    $region4: #{tpu_custom_call.1} parent=1 // loop_header_branch
      %23 = sbr.rel (%p21) target = $region8
    $region5: #{tpu_custom_call.1} parent=1 // loop_body
      %s25 = ssub.s32 %s20, 1
      %s26 = ssub.s32 %s20, 2
      %s33 = sadd.s32 1, %s28
      %p34 = scmp.ge.s32.totalorder %s33, 2
      %s35 = scalar_select %p34, 0, %s33
      %s36 = sadd.s32 1, %s27
      %s37 = scalar_select %p34, %s36, %s27
      %p38 = scmp.ge.s32.totalorder %s37, 2
      %s39 = scalar_select %p38, 0, %s37
      %s40 = ssub.s32 %s27, %s39
      %s41 = ssub.s32 %s28, %s35
      %s42 = sor.u32 %s40, %s41
      %p43 = scmp.eq.s32.totalorder %s42, 0
      %s45 = sadd.s32 %s44, 1
      %s46 = scalar_select %p43, %s44, %s45
      %p49 = pneg %p43
      %p50 = scmp.eq.s32.totalorder %s20, 3
      %p51 = por %p49, %p50
      %p52 = scmp.ne.s32.totalorder %s44, %s47
      %p53 = scmp.eq.s32.totalorder %s20, 0
      %p54 = por %p52, %p53
      %p55 = scmp.ne.s32.totalorder %s44, %s47
      %p56 = scmp.eq.s32.totalorder %s25, 3
      %p57 = por %p55, %p56
      %p58 = scmp.ne.s32.totalorder %s47, %s48
      %p59 = scmp.eq.s32.totalorder %s25, 0
      %p60 = por %p58, %p59
      %p61 = scmp.ne.s32.totalorder %s47, %s48
      %p62 = scmp.eq.s32.totalorder %s26, 3
      %p63 = por %p61, %p62
      %p65 = scmp.ne.s32.totalorder %s48, %s64
      %p66 = scmp.eq.s32.totalorder %s26, 0
      %p67 = por %p65, %p66
      %s69 = sadd.s32 %s68, 1
      %p72 = scmp.eq.s32.totalorder %s20, 3
      %p73 = scmp.ne.s32.totalorder %s68, %s70
      %p74 = scmp.eq.s32.totalorder %s20, 0
      %p75 = por %p73, %p74
      %p76 = scmp.ne.s32.totalorder %s68, %s70
      %p77 = scmp.eq.s32.totalorder %s25, 3
      %p78 = por %p76, %p77
      %p79 = scmp.ne.s32.totalorder %s70, %s71
      %p80 = scmp.eq.s32.totalorder %s25, 0
      %p81 = por %p79, %p80
      %p82 = scmp.ne.s32.totalorder %s70, %s71
      %p83 = scmp.eq.s32.totalorder %s26, 3
      %p84 = por %p82, %p83
      %p86 = scmp.ne.s32.totalorder %s71, %s85
      %p87 = scmp.eq.s32.totalorder %s26, 0
      %p88 = por %p86, %p87
      %s89 = ssub.s32 %s27, %s39
      %s90 = ssub.s32 %s28, %s35
      %s91 = sor.u32 %s89, %s90
      %p92 = scmp.eq.s32.totalorder %s91, 0
      %s94 = sadd.s32 %s93, 1
      %s95 = scalar_select %p92, %s93, %s94
      %p98 = pneg %p92
      %p99 = scmp.eq.s32.totalorder %s20, 3
      %p100 = por %p98, %p99
      %p101 = scmp.ne.s32.totalorder %s93, %s96
      %p102 = scmp.eq.s32.totalorder %s20, 0
      %p103 = por %p101, %p102
      %p104 = scmp.ne.s32.totalorder %s93, %s96
      %p105 = scmp.eq.s32.totalorder %s25, 3
      %p106 = por %p104, %p105
      %p107 = scmp.ne.s32.totalorder %s96, %s97
      %p108 = scmp.eq.s32.totalorder %s25, 0
      %p109 = por %p107, %p108
      %p110 = scmp.ne.s32.totalorder %s96, %s97
      %p111 = scmp.eq.s32.totalorder %s26, 3
      %p112 = por %p110, %p111
      %p114 = scmp.ne.s32.totalorder %s97, %s113
      %p115 = scmp.eq.s32.totalorder %s26, 0
      %p116 = por %p114, %p115
      %s117 = ssub.s32 %s27, %s39
      %s118 = ssub.s32 %s28, %s35
      %s119 = sor.u32 %s117, %s118
      %p120 = scmp.eq.s32.totalorder %s119, 0
      %s122 = sadd.s32 %s121, 1
      %s123 = scalar_select %p120, %s121, %s122
      %p126 = pneg %p120
      %p127 = scmp.eq.s32.totalorder %s20, 3
      %p128 = por %p126, %p127
      %p129 = scmp.ne.s32.totalorder %s121, %s124
      %p130 = scmp.eq.s32.totalorder %s20, 0
      %p131 = por %p129, %p130
      %p132 = scmp.ne.s32.totalorder %s121, %s124
      %p133 = scmp.eq.s32.totalorder %s25, 3
      %p134 = por %p132, %p133
      %p135 = scmp.ne.s32.totalorder %s124, %s125
      %p136 = scmp.eq.s32.totalorder %s25, 0
      %p137 = por %p135, %p136
      %p138 = scmp.ne.s32.totalorder %s124, %s125
      %p139 = scmp.eq.s32.totalorder %s26, 3
      %p140 = por %p138, %p139
      %p142 = scmp.ne.s32.totalorder %s125, %s141
      %p143 = scmp.eq.s32.totalorder %s26, 0
      %p144 = por %p142, %p143
      %p145 = scmp.le.s32.totalorder 1, %s20
      %p146 = scmp.lt.s32.totalorder %s20, 5
      %p147 = pnand %p145, %p146
      %p148 = pneg %p147
      // Predicated region
      $region9: #{tpu_custom_call.1} parent=5 // pred_check
        _
      $region10: #{tpu_custom_call.1} parent=5 // pred_check_branch
        %150 = sbr.rel (%p147) target = $region12
      $region11: #{tpu_custom_call.1} parent=5 // pred_region
        %s151 = ssub.s32 %s20, 1
        // Predicated region
        $region13: #{tpu_custom_call.1} parent=11 // pred_check
          %p152 = pneg %p81
        $region14: #{tpu_custom_call.1} parent=11 // pred_check_branch
          %154 = sbr.rel (%p152) target = $region16
        $region15: #{tpu_custom_call.1} parent=11 // pred_region
          %s156 = ssub.s32 1024, 1024
          %157 = vsyncadd [#allocation6], %s156
          %s158 = sshll.u32 [#allocation5], 4
          %s159 = int_to_ptr.vmem [resolvable:$true] %s158
          %164 = dma.hbm_to_vmem [thread:$0]  %s1, 1024, %s159, [#allocation6], 64, 64, 4
        $region16: #{tpu_custom_call.1} parent=11 // pred_fallthru
          _
      $region12: #{tpu_custom_call.1} parent=5 // pred_fallthru
        _
      %p165 = scmp.lt.s32.totalorder %s20, 4
      // Predicated region
      $region17: #{tpu_custom_call.1} parent=5 // pred_check
        %p166 = pneg %p165
      $region18: #{tpu_custom_call.1} parent=5 // pred_check_branch
        %168 = sbr.rel (%p166) target = $region20
      $region19: #{tpu_custom_call.1} parent=5 // pred_region
        // Predicated region
        $region21: #{tpu_custom_call.1} parent=19 // pred_check
          %p169 = pneg %p54
        $region22: #{tpu_custom_call.1} parent=19 // pred_check_branch
          %171 = sbr.rel (%p169) target = $region24
        $region23: #{tpu_custom_call.1} parent=19 // pred_region
          %s172 = sand.u32 %s44, 1
          %s173 = scalar_lea.sflag [#allocation3], %s172
          %s174 = sand.u32 %s44, 1
          %s175 = smul.addr %s174, 64
          %s176 = scalar_lea.vmem [#allocation2], %s175
          %s177 = smul.u32 16, %s28
          %s179 = ssub.s32 1024, 1024
          %180 = vsyncadd %s173, %s179
          %s181 = smul.addr %s27, 32
          %s182 = sadd.s32 %s177, %s181
          %s183 = smul.addr %s182, 64
          %s184 = scalar_lea.hbm %s0, %s183
          %s185 = sshll.u32 %s176, 4
          %s186 = int_to_ptr.vmem [resolvable:$true] %s185
          %191 = dma.hbm_to_vmem [thread:$0]  %s184, 1024, %s186, %s173, 64, 64, 4
        $region24: #{tpu_custom_call.1} parent=19 // pred_fallthru
          _
      $region20: #{tpu_custom_call.1} parent=5 // pred_fallthru
        _
      %p192 = scmp.le.s32.totalorder 1, %s20
      %p193 = scmp.lt.s32.totalorder %s20, 5
      %p194 = pnand %p192, %p193
      %p195 = pneg %p194
      // Predicated region
      $region25: #{tpu_custom_call.1} parent=5 // pred_check
        _
      $region26: #{tpu_custom_call.1} parent=5 // pred_check_branch
        %197 = sbr.rel (%p194) target = $region28
      $region27: #{tpu_custom_call.1} parent=5 // pred_region
        %s198 = ssub.s32 %s20, 1
        %s199 = sand.u32 %s47, 1
        %s200 = scalar_lea.sflag [#allocation3], %s199
        %s201 = sand.u32 %s47, 1
        %s202 = smul.addr %s201, 64
        %s203 = scalar_lea.vmem [#allocation2], %s202
        // Predicated region
        $region29: #{tpu_custom_call.1} parent=27 // pred_check
          %p204 = pneg %p60
        $region30: #{tpu_custom_call.1} parent=27 // pred_check_branch
          %206 = sbr.rel (%p204) target = $region32
        $region31: #{tpu_custom_call.1} parent=27 // pred_region
          %207 = dma.done %s200, 1024
        $region32: #{tpu_custom_call.1} parent=27 // pred_fallthru
          _
        // Predicated region
        $region33: #{tpu_custom_call.1} parent=27 // pred_check
          %p208 = pneg %p81
        $region34: #{tpu_custom_call.1} parent=27 // pred_check_branch
          %210 = sbr.rel (%p208) target = $region36
        $region35: #{tpu_custom_call.1} parent=27 // pred_region
          %211 = dma.done [#allocation6], 1024
        $region36: #{tpu_custom_call.1} parent=27 // pred_fallthru
          _
        %s212 = sand.u32 %s47, 1
        %s213 = scalar_lea.sflag [#allocation3], %s212
        %s214 = sand.u32 %s47, 1
        %s215 = smul.addr %s214, 64
        %s216 = scalar_lea.vmem [#allocation2], %s215
        %p217 = pneg %p60
        %p218 = pneg %p57
        %p219 = pneg %p81
        %p220 = pneg %p78
        %p221 = pneg %p109
        %p222 = pneg %p106
        %s223 = sand.u32 %s96, 1
        %s224 = scalar_lea.sflag [#allocation4], %s223
        %s225 = sand.u32 %s96, 1
        %s226 = smul.addr %s225, 64
        %s227 = scalar_lea.vmem [#allocation7], %s226
        %p228 = pneg %p137
        %p229 = pneg %p134
        %s230 = sand.u32 %s124, 1
        %s231 = scalar_lea.sflag [#allocation9], %s230
        %s232 = sand.u32 %s124, 1
        %s233 = smul.addr %s232, 2
        %s234 = scalar_lea.vmem [#allocation8], %s233
        %s235 = smul.u32 16, %s30
        %s236 = smul.u32 16, %s30
        %v238 = vld [vmem:[%s203] sm:$0xf]
        %v239 = vld [vmem:[%s203 + $0x4] sm:$0xf]
        %v240 = vld [vmem:[%s203 + $0x8] sm:$0xf]
        %v241 = vld [vmem:[%s203 + $0xc] sm:$0xf]
        %v242 = vld [vmem:[%s203 + $0x10] sm:$0xf]
        %v243 = vld [vmem:[%s203 + $0x14] sm:$0xf]
        %v244 = vld [vmem:[%s203 + $0x18] sm:$0xf]
        %v245 = vld [vmem:[%s203 + $0x1c] sm:$0xf]
        %v246 = vld [vmem:[%s203 + $0x20] sm:$0xf]
        %v247 = vld [vmem:[%s203 + $0x24] sm:$0xf]
        %v248 = vld [vmem:[%s203 + $0x28] sm:$0xf]
        %v249 = vld [vmem:[%s203 + $0x2c] sm:$0xf]
        %v250 = vld [vmem:[%s203 + $0x30] sm:$0xf]
        %v251 = vld [vmem:[%s203 + $0x34] sm:$0xf]
        %v252 = vld [vmem:[%s203 + $0x38] sm:$0xf]
        %v253 = vld [vmem:[%s203 + $0x3c] sm:$0xf]
        %v254 = vld [vmem:[#allocation5] sm:$0xf]
        %v255 = vld [vmem:[#allocation5 + $0x4] sm:$0xf]
        %v256 = vld [vmem:[#allocation5 + $0x8] sm:$0xf]
        %v257 = vld [vmem:[#allocation5 + $0xc] sm:$0xf]
        %v258 = vld [vmem:[#allocation5 + $0x10] sm:$0xf]
        %v259 = vld [vmem:[#allocation5 + $0x14] sm:$0xf]
        %v260 = vld [vmem:[#allocation5 + $0x18] sm:$0xf]
        %v261 = vld [vmem:[#allocation5 + $0x1c] sm:$0xf]
        %v262 = vld [vmem:[#allocation5 + $0x20] sm:$0xf]
        %v263 = vld [vmem:[#allocation5 + $0x24] sm:$0xf]
        %v264 = vld [vmem:[#allocation5 + $0x28] sm:$0xf]
        %v265 = vld [vmem:[#allocation5 + $0x2c] sm:$0xf]
        %v266 = vld [vmem:[#allocation5 + $0x30] sm:$0xf]
        %v267 = vld [vmem:[#allocation5 + $0x34] sm:$0xf]
        %v268 = vld [vmem:[#allocation5 + $0x38] sm:$0xf]
        %v269 = vld [vmem:[#allocation5 + $0x3c] sm:$0xf]
        %v286 = vunpack.c.l.b16 %v238
        %v287 = vunpack.c.l.b16 %v239
        %v288 = vunpack.c.l.b16 %v240
        %v289 = vunpack.c.l.b16 %v241
        %v290 = vunpack.c.l.b16 %v242
        %v291 = vunpack.c.l.b16 %v243
        %v292 = vunpack.c.l.b16 %v244
        %v293 = vunpack.c.l.b16 %v245
        %v294 = vunpack.c.l.b16 %v246
        %v295 = vunpack.c.l.b16 %v247
        %v296 = vunpack.c.l.b16 %v248
        %v297 = vunpack.c.l.b16 %v249
        %v298 = vunpack.c.l.b16 %v250
        %v299 = vunpack.c.l.b16 %v251
        %v300 = vunpack.c.l.b16 %v252
        %v301 = vunpack.c.l.b16 %v253
        %v302 = vpack.c.b16 %v287, %v286
        %v303 = vpack.c.b16 %v289, %v288
        %v304 = vpack.c.b16 %v291, %v290
        %v305 = vpack.c.b16 %v293, %v292
        %v306 = vpack.c.b16 %v295, %v294
        %v307 = vpack.c.b16 %v297, %v296
        %v308 = vpack.c.b16 %v299, %v298
        %v309 = vpack.c.b16 %v301, %v300
        %v334 = vunpack.c.l.b16 %v254
        %v335 = vunpack.c.l.b16 %v255
        %v336 = vunpack.c.l.b16 %v256
        %v337 = vunpack.c.l.b16 %v257
        %v338 = vunpack.c.l.b16 %v258
        %v339 = vunpack.c.l.b16 %v259
        %v340 = vunpack.c.l.b16 %v260
        %v341 = vunpack.c.l.b16 %v261
        %v342 = vunpack.c.l.b16 %v262
        %v343 = vunpack.c.l.b16 %v263
        %v344 = vunpack.c.l.b16 %v264
        %v345 = vunpack.c.l.b16 %v265
        %v346 = vunpack.c.l.b16 %v266
        %v347 = vunpack.c.l.b16 %v267
        %v348 = vunpack.c.l.b16 %v268
        %v349 = vunpack.c.l.b16 %v269
        %v350 = vpack.c.b16 %v335, %v334
        %v351 = vpack.c.b16 %v337, %v336
        %v352 = vpack.c.b16 %v339, %v338
        %v353 = vpack.c.b16 %v341, %v340
        %v354 = vpack.c.b16 %v343, %v342
        %v355 = vpack.c.b16 %v345, %v344
        %v356 = vpack.c.b16 %v347, %v346
        %v357 = vpack.c.b16 %v349, %v348
        %366 = vmatprep.subr.bf16.mxu0 0
        %367 = vmatpush1.bf16.msra.mxu0 %v350
        %368 = vmatprep.subr.bf16.mxu0 0
        %369 = vmatpush1.bf16.msra.mxu0 %v351
        %370 = vmatprep.subr.bf16.mxu0 0
        %371 = vmatpush1.bf16.msra.mxu0 %v352
        %372 = vmatprep.subr.bf16.mxu0 0
        %373 = vmatpush1.bf16.msra.mxu0 %v353
        %374 = vmatprep.subr.bf16.mxu0 0
        %375 = vmatpush1.bf16.msra.mxu0 %v354
        %376 = vmatprep.subr.bf16.mxu0 0
        %377 = vmatpush1.bf16.msra.mxu0 %v355
        %378 = vmatprep.subr.bf16.mxu0 0
        %379 = vmatpush1.bf16.msra.mxu0 %v356
        %380 = vmatprep.subr.bf16.mxu0 0
        %381 = vmatpush1.bf16.msra.mxu0 %v357
        %382 = vmatprep.subr.bf16.mxu0 0
        %383 = vmatpush1.bf16.msra.mxu0 0
        %384 = vmatprep.subr.bf16.mxu0 0
        %385 = vmatpush1.bf16.msra.mxu0 0
        %386 = vmatprep.subr.bf16.mxu0 0
        %387 = vmatpush1.bf16.msra.mxu0 0
        %388 = vmatprep.subr.bf16.mxu0 0
        %389 = vmatpush1.bf16.msra.mxu0 0
        %390 = vmatprep.subr.bf16.mxu0 0
        %391 = vmatpush1.bf16.msra.mxu0 0
        %392 = vmatprep.subr.bf16.mxu0 0
        %393 = vmatpush1.bf16.msra.mxu0 0
        %394 = vmatprep.subr.bf16.mxu0 0
        %395 = vmatpush1.bf16.msra.mxu0 0
        %396 = vmatprep.subr.bf16.mxu0 0
        %397 = vmatpush1.bf16.msra.mxu0 0
        %398 = vmatprep.mubr.bf16.mxu0 0
        %399 = vmatmul.mubr.bf16.gmra.mrb[0].mxu0 %v302
        %v400 = vpop.f32.mrb[0].mxu0
        %v401 = vadd.f32 0.0, %v400
        %v402 = vpop.f32.mrb[0].mxu0
        %v403 = vpop.f32.mrb[0].mxu0
        %v404 = vadd.f32 0.0, %v403
        %v405 = vpop.f32.mrb[0].mxu0
        %406 = vmatprep.mubr.bf16.mxu0 0
        %407 = vmatmul.mubr.bf16.gmra.mrb[0].mxu0 %v303
        %v408 = vpop.f32.mrb[0].mxu0
        %v409 = vadd.f32 0.0, %v408
        %v410 = vpop.f32.mrb[0].mxu0
        %v411 = vpop.f32.mrb[0].mxu0
        %v412 = vadd.f32 0.0, %v411
        %v413 = vpop.f32.mrb[0].mxu0
        %414 = vmatprep.mubr.bf16.mxu0 0
        %415 = vmatmul.mubr.bf16.gmra.mrb[0].mxu0 %v304
        %v416 = vpop.f32.mrb[0].mxu0
        %v417 = vadd.f32 0.0, %v416
        %v418 = vpop.f32.mrb[0].mxu0
        %v419 = vpop.f32.mrb[0].mxu0
        %v420 = vadd.f32 0.0, %v419
        %v421 = vpop.f32.mrb[0].mxu0
        %422 = vmatprep.mubr.bf16.mxu0 0
        %423 = vmatmul.mubr.bf16.gmra.mrb[0].mxu0 %v305
        %v424 = vpop.f32.mrb[0].mxu0
        %v425 = vadd.f32 0.0, %v424
        %v426 = vpop.f32.mrb[0].mxu0
        %v427 = vpop.f32.mrb[0].mxu0
        %v428 = vadd.f32 0.0, %v427
        %v429 = vpop.f32.mrb[0].mxu0
        %430 = vmatprep.mubr.bf16.mxu0 0
        %431 = vmatmul.mubr.bf16.gmra.mrb[0].mxu0 %v306
        %v432 = vpop.f32.mrb[0].mxu0
        %v433 = vadd.f32 0.0, %v432
        %v434 = vpop.f32.mrb[0].mxu0
        %v435 = vpop.f32.mrb[0].mxu0
        %v436 = vadd.f32 0.0, %v435
        %v437 = vpop.f32.mrb[0].mxu0
        %438 = vmatprep.mubr.bf16.mxu0 0
        %439 = vmatmul.mubr.bf16.gmra.mrb[0].mxu0 %v307
        %v440 = vpop.f32.mrb[0].mxu0
        %v441 = vadd.f32 0.0, %v440
        %v442 = vpop.f32.mrb[0].mxu0
        %v443 = vpop.f32.mrb[0].mxu0
        %v444 = vadd.f32 0.0, %v443
        %v445 = vpop.f32.mrb[0].mxu0
        %446 = vmatprep.mubr.bf16.mxu0 0
        %447 = vmatmul.mubr.bf16.gmra.mrb[0].mxu0 %v308
        %v448 = vpop.f32.mrb[0].mxu0
        %v449 = vadd.f32 0.0, %v448
        %v450 = vpop.f32.mrb[0].mxu0
        %v451 = vpop.f32.mrb[0].mxu0
        %v452 = vadd.f32 0.0, %v451
        %v453 = vpop.f32.mrb[0].mxu0
        %454 = vmatprep.mubr.bf16.mxu0 0
        %455 = vmatmul.mubr.bf16.gmra.mrb[0].mxu0 %v309
        %v456 = vpop.f32.mrb[0].mxu0
        %v457 = vadd.f32 0.0, %v456
        %v458 = vpop.f32.mrb[0].mxu0
        %v459 = vpop.f32.mrb[0].mxu0
        %v460 = vadd.f32 0.0, %v459
        %v461 = vpop.f32.mrb[0].mxu0
        %462 = vdwg.mxu0
        %v463 = vadd.f32 %v401, %v404
        %v464 = vadd.f32 %v463, %v409
        %v465 = vadd.f32 %v464, %v412
        %v466 = vadd.f32 %v465, %v417
        %v467 = vadd.f32 %v466, %v420
        %v468 = vadd.f32 %v467, %v425
        %v469 = vadd.f32 %v468, %v428
        %v470 = vadd.f32 %v469, %v433
        %v471 = vadd.f32 %v470, %v436
        %v472 = vadd.f32 %v471, %v441
        %v473 = vadd.f32 %v472, %v444
        %v474 = vadd.f32 %v473, %v449
        %v475 = vadd.f32 %v474, %v452
        %v476 = vadd.f32 %v475, %v457
        %v477 = vadd.f32 %v476, %v460
        %v478 = vrot.slane %v477, 4
        %v479 = vadd.f32 %v477, %v478
        %v480 = vrot.slane %v479, 2
        %v481 = vadd.f32 %v479, %v480
        %v482 = vrot.slane %v481, 1
        %v483 = vadd.f32 %v481, %v482
        %v484 = vmul.f32 %v401, %v401
        %v485 = vmul.f32 %v404, %v404
        %v486 = vmul.f32 %v409, %v409
        %v487 = vmul.f32 %v412, %v412
        %v488 = vmul.f32 %v417, %v417
        %v489 = vmul.f32 %v420, %v420
        %v490 = vmul.f32 %v425, %v425
        %v491 = vmul.f32 %v428, %v428
        %v492 = vmul.f32 %v433, %v433
        %v493 = vmul.f32 %v436, %v436
        %v494 = vmul.f32 %v441, %v441
        %v495 = vmul.f32 %v444, %v444
        %v496 = vmul.f32 %v449, %v449
        %v497 = vmul.f32 %v452, %v452
        %v498 = vmul.f32 %v457, %v457
        %v499 = vmul.f32 %v460, %v460
        %v500 = vadd.f32 %v484, %v485
        %v501 = vadd.f32 %v500, %v486
        %v502 = vadd.f32 %v501, %v487
        %v503 = vadd.f32 %v502, %v488
        %v504 = vadd.f32 %v503, %v489
        %v505 = vadd.f32 %v504, %v490
        %v506 = vadd.f32 %v505, %v491
        %v507 = vadd.f32 %v506, %v492
        %v508 = vadd.f32 %v507, %v493
        %v509 = vadd.f32 %v508, %v494
        %v510 = vadd.f32 %v509, %v495
        %v511 = vadd.f32 %v510, %v496
        %v512 = vadd.f32 %v511, %v497
        %v513 = vadd.f32 %v512, %v498
        %v514 = vadd.f32 %v513, %v499
        %v515 = vrot.slane %v514, 4
        %v516 = vadd.f32 %v514, %v515
        %v517 = vrot.slane %v516, 2
        %v518 = vadd.f32 %v516, %v517
        %v519 = vrot.slane %v518, 1
        %v520 = vadd.f32 %v518, %v519
        %vm521 = vcmask 1040384
        %v522 = vsel %vm521, %v483, %v520
        %523 = vst [vmem:[%s234] sm:$0x3] %v522
        %v524 = vpack.c.bf16 %v404, %v401
        %v525 = vpack.c.bf16 %v412, %v409
        %v526 = vpack.c.bf16 %v420, %v417
        %v527 = vpack.c.bf16 %v428, %v425
        %v528 = vpack.c.bf16 %v436, %v433
        %v529 = vpack.c.bf16 %v444, %v441
        %v530 = vpack.c.bf16 %v452, %v449
        %v531 = vpack.c.bf16 %v460, %v457
        %v540 = vunpack.c.l.b16 %v524
        %v541 = vunpack.c.h.b16 %v524
        %v542 = vunpack.c.l.b16 %v525
        %v543 = vunpack.c.h.b16 %v525
        %v544 = vunpack.c.l.b16 %v526
        %v545 = vunpack.c.h.b16 %v526
        %v546 = vunpack.c.l.b16 %v527
        %v547 = vunpack.c.h.b16 %v527
        %v548 = vunpack.c.l.b16 %v528
        %v549 = vunpack.c.h.b16 %v528
        %v550 = vunpack.c.l.b16 %v529
        %v551 = vunpack.c.h.b16 %v529
        %v552 = vunpack.c.l.b16 %v530
        %v553 = vunpack.c.h.b16 %v530
        %v554 = vunpack.c.l.b16 %v531
        %v555 = vunpack.c.h.b16 %v531
        %v556 = vpack.c.b16 %v540, %v540
        %v557 = vpack.c.b16 %v541, %v541
        %v558 = vpack.c.b16 %v542, %v542
        %v559 = vpack.c.b16 %v543, %v543
        %v560 = vpack.c.b16 %v544, %v544
        %v561 = vpack.c.b16 %v545, %v545
        %v562 = vpack.c.b16 %v546, %v546
        %v563 = vpack.c.b16 %v547, %v547
        %v564 = vpack.c.b16 %v548, %v548
        %v565 = vpack.c.b16 %v549, %v549
        %v566 = vpack.c.b16 %v550, %v550
        %v567 = vpack.c.b16 %v551, %v551
        %v568 = vpack.c.b16 %v552, %v552
        %v569 = vpack.c.b16 %v553, %v553
        %v570 = vpack.c.b16 %v554, %v554
        %v571 = vpack.c.b16 %v555, %v555
        %588 = vst [vmem:[%s227] sm:$0xf] %v556
        %589 = vst [vmem:[%s227 + $0x4] sm:$0xf] %v557
        %590 = vst [vmem:[%s227 + $0x8] sm:$0xf] %v558
        %591 = vst [vmem:[%s227 + $0xc] sm:$0xf] %v559
        %592 = vst [vmem:[%s227 + $0x10] sm:$0xf] %v560
        %593 = vst [vmem:[%s227 + $0x14] sm:$0xf] %v561
        %594 = vst [vmem:[%s227 + $0x18] sm:$0xf] %v562
        %595 = vst [vmem:[%s227 + $0x1c] sm:$0xf] %v563
        %596 = vst [vmem:[%s227 + $0x20] sm:$0xf] %v564
        %597 = vst [vmem:[%s227 + $0x24] sm:$0xf] %v565
        %598 = vst [vmem:[%s227 + $0x28] sm:$0xf] %v566
        %599 = vst [vmem:[%s227 + $0x2c] sm:$0xf] %v567
        %600 = vst [vmem:[%s227 + $0x30] sm:$0xf] %v568
        %601 = vst [vmem:[%s227 + $0x34] sm:$0xf] %v569
        %602 = vst [vmem:[%s227 + $0x38] sm:$0xf] %v570
        %603 = vst [vmem:[%s227 + $0x3c] sm:$0xf] %v571
        %s604 = sand.u32 %s96, 1
        %s605 = scalar_lea.sflag [#allocation4], %s604
        %s606 = sand.u32 %s96, 1
        %s607 = smul.addr %s606, 64
        %s608 = scalar_lea.vmem [#allocation7], %s607
        %s609 = sand.u32 %s124, 1
        %s610 = scalar_lea.sflag [#allocation9], %s609
        %s611 = sand.u32 %s124, 1
        %s612 = smul.addr %s611, 2
        %s613 = scalar_lea.vmem [#allocation8], %s612
        // Predicated region
        $region37: #{tpu_custom_call.1} parent=27 // pred_check
          %p614 = pneg %p106
        $region38: #{tpu_custom_call.1} parent=27 // pred_check_branch
          %616 = sbr.rel (%p614) target = $region40
        $region39: #{tpu_custom_call.1} parent=27 // pred_region
          %s617 = smul.u32 16, %s30
          %s619 = ssub.s32 1024, 1024
          %620 = vsyncadd %s605, %s619
          %s621 = smul.addr %s29, 32
          %s622 = sadd.s32 %s617, %s621
          %s623 = smul.addr %s622, 64
          %s624 = scalar_lea.hbm %s2, %s623
          %s625 = sshll.u32 %s608, 4
          %s626 = int_to_ptr.vmem [resolvable:$true] %s625
          %631 = dma.vmem_to_hbm [thread:$0]  %s626, 1024, %s624, %s605, 64, 64, 4
        $region40: #{tpu_custom_call.1} parent=27 // pred_fallthru
          _
        // Predicated region
        $region41: #{tpu_custom_call.1} parent=27 // pred_check
          %p632 = pneg %p134
        $region42: #{tpu_custom_call.1} parent=27 // pred_check_branch
          %634 = sbr.rel (%p632) target = $region44
        $region43: #{tpu_custom_call.1} parent=27 // pred_region
          %s636 = ssub.s32 32, 32
          %637 = vsyncadd %s610, %s636
          %s638 = smul.addr %s29, 2
          %s639 = sadd.s32 %s30, %s638
          %s640 = smul.addr %s639, 32
          %s641 = scalar_lea.hbm %s3, %s640
          %s643 = sshll.u32 %s613, 4
          %s644 = int_to_ptr.vmem [resolvable:$true] %s643
          %646 = dma.vmem_to_hbm [thread:$0]  %s644, 32, %s641, %s610
        $region44: #{tpu_custom_call.1} parent=27 // pred_fallthru
          _
      $region28: #{tpu_custom_call.1} parent=5 // pred_fallthru
        _
      %p647 = scmp.le.s32.totalorder 2, %s20
      // Predicated region
      $region45: #{tpu_custom_call.1} parent=5 // pred_check
        %p648 = pneg %p647
      $region46: #{tpu_custom_call.1} parent=5 // pred_check_branch
        %650 = sbr.rel (%p648) target = $region48
      $region47: #{tpu_custom_call.1} parent=5 // pred_region
        %s651 = ssub.s32 %s20, 2
        // Predicated region
        $region49: #{tpu_custom_call.1} parent=47 // pred_check
          %p652 = pneg %p112
        $region50: #{tpu_custom_call.1} parent=47 // pred_check_branch
          %654 = sbr.rel (%p652) target = $region52
        $region51: #{tpu_custom_call.1} parent=47 // pred_region
          %s655 = sand.u32 %s97, 1
          %s656 = scalar_lea.sflag [#allocation4], %s655
          %s657 = sand.u32 %s97, 1
          %s658 = smul.addr %s657, 64
          %s659 = scalar_lea.vmem [#allocation7], %s658
          %660 = dma.done %s656, 1024
        $region52: #{tpu_custom_call.1} parent=47 // pred_fallthru
          _
        // Predicated region
        $region53: #{tpu_custom_call.1} parent=47 // pred_check
          %p661 = pneg %p140
        $region54: #{tpu_custom_call.1} parent=47 // pred_check_branch
          %663 = sbr.rel (%p661) target = $region56
        $region55: #{tpu_custom_call.1} parent=47 // pred_region
          %s664 = sand.u32 %s125, 1
          %s665 = scalar_lea.sflag [#allocation9], %s664
          %s666 = sand.u32 %s125, 1
          %s667 = smul.addr %s666, 2
          %s668 = scalar_lea.vmem [#allocation8], %s667
          %669 = dma.done %s665, 32
        $region56: #{tpu_custom_call.1} parent=47 // pred_fallthru
          _
      $region48: #{tpu_custom_call.1} parent=5 // pred_fallthru
        _
    $region6: #{tpu_custom_call.1} parent=1 // loop_footer
      %s24 = sadd.s32 1, %s20
    $region7: #{tpu_custom_call.1} parent=1 // loop_footer_branch
      %19 = sbr.rel target = $region3
    $region8: #{tpu_custom_call.1} parent=1 // loop_exit
      _
    %670 = vsyncpa [#allocation3], 1
    %s671 = scalar_lea.sflag [#allocation3], 1
    %672 = vsyncpa %s671, 1
    %673 = vsyncpa [#allocation6], 1
    %674 = vsyncpa [#allocation4], 1
    %s675 = scalar_lea.sflag [#allocation4], 1
    %676 = vsyncpa %s675, 1
    %677 = vsyncpa [#allocation9], 1
    %s678 = scalar_lea.sflag [#allocation9], 1
    %679 = vsyncpa %s678, 1

</llo_original>
